<compile_context>
chip_gen: v7x
topology: tpu7x:2x2x1
jax: 0.10.0
libtpu: 0.0.40
codegen_flags: <defaults>
</compile_context>

<pallas_src>
import jax
import jax.numpy as jnp
from jax.experimental import pallas as pl
from jax.experimental.pallas import tpu as pltpu


def _gauss_kernel(mu_ref, inv_ref, x_ref, o_ref):
    # mu_ref / inv_ref live in SMEM as shape-(1,) scalars.
    mu = mu_ref[0]
    inv = inv_ref[0]                       # -0.5 / sigma^2 (hoisted to wrapper)
    diff = x_ref[...] - mu
    o_ref[...] = jnp.exp((diff * diff) * inv)


def _base_tile_rows():
    """Per-generation tile height (rows of a 512-lane f32 slab)."""
    try:
        kind = jax.devices()[0].device_kind.lower()
    except Exception:
        return 1024
    if ("v6" in kind) or ("v7" in kind) or ("7x" in kind):
        return 2048        # 4 MiB tile; 16 MiB double-buffered in+out
    return 1024            # 2 MiB tile; safe under v5e's 16 MiB scoped VMEM


def learnable_gaussian_activation(x, mu, sigma):
    """x: any shape (e.g. NCHW) float32; mu, sigma: shape (1,) float32."""
    orig_shape = x.shape
    total = x.size

    # Hoist all scalar math out of the kernel.
    mu = mu.reshape(1).astype(jnp.float32)
    sigma = sigma.reshape(1).astype(jnp.float32)
    inv = (-0.5) / (sigma * sigma)

    # Lane-dense last dim; prefer a lane width that divides the element count
    # so no padding copy is needed at all.
    lane = 512
    if total % lane != 0:
        for cand in (256, 128):
            if total % cand == 0:
                lane = cand
                break
        else:
            lane = 128

    x_flat = x.reshape(-1)
    padded_total = pl.cdiv(total, lane) * lane
    if padded_total != total:
        x_flat = jnp.pad(x_flat, (0, padded_total - total))
    rows = padded_total // lane
    x2d = x_flat.reshape(rows, lane)

    # Tile height: multiple of 8 (sublane), capped per generation, and capped
    # again so the "parallel" grid axis has >= 2 tiles when the input allows
    # it (keeps both v7x TensorCores busy). Tiny inputs use a full-dim block.
    if rows < 8:
        tile_rows = rows
    else:
        tile_rows = max(8, min(_base_tile_rows(), (rows // 8) * 8))
        if rows >= 16:
            cap = max(8, ((rows // 2) // 8) * 8)
            tile_rows = min(tile_rows, cap)

    grid = (pl.cdiv(rows, tile_rows),)

    # VMEM budget: 2 double-buffered tiles (in + out) plus headroom.
    tile_bytes = tile_rows * lane * 4
    vmem_limit = int(max(16 << 20, min(64 << 20, 4 * tile_bytes + (8 << 20))))

    out2d = pl.pallas_call(
        _gauss_kernel,
        out_shape=jax.ShapeDtypeStruct((rows, lane), x.dtype),
        grid_spec=pl.GridSpec(
            grid=grid,
            in_specs=[
                pl.BlockSpec(memory_space=pltpu.MemorySpace.SMEM),  # mu
                pl.BlockSpec(memory_space=pltpu.MemorySpace.SMEM),  # inv
                pl.BlockSpec((tile_rows, lane), lambda i: (i, 0)),  # x tile
            ],
            out_specs=pl.BlockSpec((tile_rows, lane), lambda i: (i, 0)),
        ),
        compiler_params=pltpu.CompilerParams(
            dimension_semantics=("parallel",),
            vmem_limit_bytes=vmem_limit,
        ),
    )(mu, inv, x2d)
    # TODO(synk): if the caller can donate x, add input_output_aliases={2: 0}
    # to reuse x's HBM buffer for the output.

    out = out2d.reshape(-1)
    if padded_total != total:
        out = out[:total]
    return out.reshape(orig_shape)


if __name__ == "__main__":
    key = jax.random.PRNGKey(0)
    k_x, k_mu = jax.random.split(key)

    # Input consistent with an NCHW conv-style activation.
    x = jax.random.normal(k_x, (2, 4, 16, 16), dtype=jnp.float32)

    # Deterministic parameter init matching the module's __init__ shapes:
    #   mu ~ randn(1), sigma = ones(1)
    mu = jax.random.normal(k_mu, (1,), dtype=jnp.float32)
    sigma = jnp.ones((1,), dtype=jnp.float32)

    out = learnable_gaussian_activation(x, mu, sigma)
    out = jax.block_until_ready(out)

    # Reference check in plain JAX.
    ref = jnp.exp(-((x - mu[0]) ** 2) / (2.0 * sigma[0] ** 2))
    assert out.shape == x.shape
    assert jnp.allclose(out, ref, atol=1e-6, rtol=1e-6)

    print("KERNEL_OK")
</pallas_src>

<mosaic_0001>
module attributes {stable_mosaic.version = 11 : i64} {
  func.func @_gauss_kernel(%arg0: i32, %arg1: memref<1xf32, #tpu.memory_space<smem>>, %arg2: memref<1xf32, #tpu.memory_space<smem>>, %arg3: memref<4x512xf32, #tpu.memory_space<vmem>>, %arg4: memref<4x512xf32, #tpu.memory_space<vmem>>) attributes {dimension_semantics = [#tpu.dimension_semantics<parallel>], iteration_bounds = array<i64: 1>, scalar_prefetch = 0 : i64, scratch_operands = 0 : i64, tpu.core_type = #tpu.core_type<tc>, window_params = [{transform_indices = @transform_0, window_bounds = array<i64: 1>}, {transform_indices = @transform_1, window_bounds = array<i64: 1>}, {transform_indices = @transform_2, window_bounds = array<i64: 4, 512>}, {transform_indices = @transform_3, window_bounds = array<i64: 4, 512>}]} {
    %c0 = arith.constant 0 : index
    %0 = memref.load %arg1[%c0] : memref<1xf32, #tpu.memory_space<smem>>
    %c0_0 = arith.constant 0 : index
    %1 = memref.load %arg2[%c0_0] : memref<1xf32, #tpu.memory_space<smem>>
    %c0_1 = arith.constant 0 : index
    %c0_2 = arith.constant 0 : index
    %2 = vector.load %arg3[%c0_1, %c0_2] : memref<4x512xf32, #tpu.memory_space<vmem>>, vector<4x512xf32>
    %3 = vector.broadcast %0 : f32 to vector<4x512xf32>
    %4 = arith.subf %2, %3 : vector<4x512xf32>
    %5 = arith.mulf %4, %4 : vector<4x512xf32>
    %6 = vector.broadcast %1 : f32 to vector<4x512xf32>
    %7 = arith.mulf %5, %6 : vector<4x512xf32>
    %8 = math.exp %7 : vector<4x512xf32>
    %c0_3 = arith.constant 0 : index
    %c0_4 = arith.constant 0 : index
    %9 = vector.load %arg4[%c0_3, %c0_4] : memref<4x512xf32, #tpu.memory_space<vmem>>, vector<4x512xf32>
    tpu.vector_store %arg4[%c0_3, %c0_4], %8 {strides = array<i32>} : memref<4x512xf32, #tpu.memory_space<vmem>>, vector<4x512xf32>,
    return
  }
  func.func @transform_0(%arg0: i32) -> i32 {
    %c0_i32 = arith.constant 0 : i32
    %c0_i32_0 = arith.constant 0 : i32
    return %c0_i32 : i32
  }
  func.func @transform_1(%arg0: i32) -> i32 {
    %c0_i32 = arith.constant 0 : i32
    %c0_i32_0 = arith.constant 0 : i32
    return %c0_i32 : i32
  }
  func.func @transform_2(%arg0: i32) -> (i32, i32) {
    %c0_i32 = arith.constant 0 : i32
    %c0_i32_0 = arith.constant 0 : i32
    return %arg0, %c0_i32 : i32, i32
  }
  func.func @transform_3(%arg0: i32) -> (i32, i32) {
    %c0_i32 = arith.constant 0 : i32
    %c0_i32_0 = arith.constant 0 : i32
    return %arg0, %c0_i32 : i32, i32
  }
}

</mosaic_0001>

<llo_original>
// kernel: tpu_custom_call.1
$region0: #{tpu_custom_call.1}
  #allocation0 [shape = 'u32[]', space=smem, size = 0x4, offset = 0x4, fixed_abs, tag = 'smem constant byte address 0x4 - core index']
  #allocation1 [shape = 'u32[144,128]{1,0:T(1,128)}', space=vmem, size = 0x12000, scoped, tag = 'internal scratch']
  #allocation2 [shape = 'f32[1]{0:T(128)S(6)}', space=smem, size = 0x200, scoped, tag = 'scoped memory for tpu_custom_call.1']
  #allocation3 [shape = 'f32[1]{0:T(128)S(6)}', space=smem, size = 0x200, scoped, tag = 'scoped memory for tpu_custom_call.1']
  %s0 = inlined_call_operand.<no memory space> [shape: f32[1], index: 0, kind: input, shape index: {}]
  %s1 = inlined_call_operand.<no memory space> [shape: f32[1], index: 1, kind: input, shape index: {}]
  %s2 = inlined_call_operand.hbm [shape: f32[4,512], index: 2, kind: input, shape index: {}]
  %s3 = inlined_call_operand.hbm [shape: f32[4,512], index: 3, kind: output, shape index: {}]
  %s4 = sld [smem:[#allocation0]]
  $region26: #{tpu_custom_call.1} parent=0
    _
  %s6 = ssub.s32 1, %s4
  %s7 = scalar_select 0, %s6, %s4
  %8 = sst [smem:[#allocation2]] %s0
  %9 = sst [smem:[#allocation3]] %s1
  $region1: #{tpu_custom_call.1} parent=0
    #allocation4 [shape = 'u8[8192]{0}', space=vmem, size = 0x2000, scoped, tag = 'input window, operand 2, single buffered']
    #allocation5 [shape = 's32[1]{0}', space=sflag, size = 0x4, scoped, tag = 'scoped memory for tpu_custom_call.1']
    #allocation6 [shape = 's32[1]{0}', space=sflag, size = 0x4, scoped, tag = 'scoped memory for tpu_custom_call.1']
    #allocation7 [shape = 'u8[8192]{0}', space=vmem, size = 0x2000, scoped, tag = 'output window, operand 0, single buffered']
    %10 = vsyncpa [#allocation5], 0
    %11 = vsyncpa [#allocation6], 0
    // Predicated region
    $region2: #{tpu_custom_call.1} parent=1 // pred_check
      _
    $region3: #{tpu_custom_call.1} parent=1 // pred_check_branch
      %13 = sbr.rel (0) target = $region5
    $region4: #{tpu_custom_call.1} parent=1 // pred_region
      _
    $region5: #{tpu_custom_call.1} parent=1 // pred_fallthru
      _
    // Predicated region
    $region6: #{tpu_custom_call.1} parent=1 // pred_check
      _
    $region7: #{tpu_custom_call.1} parent=1 // pred_check_branch
      %15 = sbr.rel (0) target = $region9
    $region8: #{tpu_custom_call.1} parent=1 // pred_region
      _
    $region9: #{tpu_custom_call.1} parent=1 // pred_fallthru
      _
    // Predicated region
    $region10: #{tpu_custom_call.1} parent=1 // pred_check
      _
    $region11: #{tpu_custom_call.1} parent=1 // pred_check_branch
      %17 = sbr.rel (0) target = $region13
    $region12: #{tpu_custom_call.1} parent=1 // pred_region
      %s19 = ssub.s32 256, 256
      %20 = vsyncadd [#allocation5], %s19
      %s22 = sshll.u32 [#allocation4], 4
      %s23 = int_to_ptr.vmem [resolvable:$true] %s22
      %25 = dma.hbm_to_vmem [thread:$0]  %s2, 256, %s23, [#allocation5]
    $region13: #{tpu_custom_call.1} parent=1 // pred_fallthru
      _
    // Predicated region
    $region14: #{tpu_custom_call.1} parent=1 // pred_check
      _
    $region15: #{tpu_custom_call.1} parent=1 // pred_check_branch
      %27 = sbr.rel (0) target = $region17
    $region16: #{tpu_custom_call.1} parent=1 // pred_region
      %28 = dma.done [#allocation5], 256
    $region17: #{tpu_custom_call.1} parent=1 // pred_fallthru
      _
    %s29 = sld [smem:[#allocation2]]
    %s30 = sld [smem:[#allocation3]]
    %v31 = vld [vmem:[#allocation4] sm:$0xff]
    %v32 = vld [vmem:[#allocation4 + $0x8] sm:$0xff]
    %v33 = vstv %s29
    %v34 = vsub.f32 %v31, %v33
    %v35 = vsub.f32 %v32, %v33
    %v36 = vmul.f32 %v34, %v34
    %v37 = vmul.f32 %v35, %v35
    %v38 = vstv %s30
    %v39 = vmul.f32 %v36, %v38
    %v40 = vmul.f32 %v37, %v38
    %v41 = vmul.f32 %v39, 1.442695
    %v42 = vpow.pop %v41
    %v43 = vmul.f32 %v40, 1.442695
    %v44 = vpow.pop %v43
    %45 = vst [vmem:[#allocation7] sm:$0xff] %v42
    %46 = vst [vmem:[#allocation7 + $0x8] sm:$0xff] %v44
    // Predicated region
    $region18: #{tpu_custom_call.1} parent=1 // pred_check
      _
    $region19: #{tpu_custom_call.1} parent=1 // pred_check_branch
      %48 = sbr.rel (0) target = $region21
    $region20: #{tpu_custom_call.1} parent=1 // pred_region
      %s50 = ssub.s32 256, 256
      %51 = vsyncadd [#allocation6], %s50
      %s53 = sshll.u32 [#allocation7], 4
      %s54 = int_to_ptr.vmem [resolvable:$true] %s53
      %56 = dma.vmem_to_hbm [thread:$0]  %s54, 256, %s3, [#allocation6]
    $region21: #{tpu_custom_call.1} parent=1 // pred_fallthru
      _
    // Predicated region
    $region22: #{tpu_custom_call.1} parent=1 // pred_check
      _
    $region23: #{tpu_custom_call.1} parent=1 // pred_check_branch
      %58 = sbr.rel (0) target = $region25
    $region24: #{tpu_custom_call.1} parent=1 // pred_region
      %59 = dma.done [#allocation6], 256
    $region25: #{tpu_custom_call.1} parent=1 // pred_fallthru
      _
    %60 = vsyncpa [#allocation5], 1
    %61 = vsyncpa [#allocation6], 1

</llo_original>
